<compile_context>
chip_gen: v7x
topology: tpu7x:2x2x1
jax: 0.10.0
libtpu: 0.0.40
codegen_flags: <defaults>
</compile_context>

<pallas_src>
import numpy as np
import jax
import jax.numpy as jnp
from jax import lax
from jax.experimental import pallas as pl
from jax.experimental.pallas import tpu as pltpu


def _round_up(x, m):
    return ((x + m - 1) // m) * m


# ---------------------------------------------------------------------------
# Pass 1: p = W^T @ B   (streaming reduction over edge tiles).
#   w_ref : (1, TILE_E)   lane-dense weight-row tile (f32)
#   b_ref : (TILE_E, D)   tail-embedding row tile (input dtype)
#   p_ref : (1, D)        f32 output, resident across the reduction grid
# ---------------------------------------------------------------------------
def _p_reduce_kernel(w_ref, b_ref, p_ref):
    @pl.when(pl.program_id(0) == 0)
    def _():
        p_ref[...] = jnp.zeros_like(p_ref)

    p_ref[...] += lax.dot_general(
        w_ref[...], b_ref[...].astype(jnp.float32),
        dimension_numbers=(((1,), (0,)), ((), ())),
        preferred_element_type=jnp.float32)


# ---------------------------------------------------------------------------
# Pass 2: scores tile = sigmoid(log(p . A_tile) + 1e-5).
#   p_ref   : (1, D)        resident p = W^T B (f32)
#   a_ref   : (TILE_E, D)   streamed syn-embedding row tile (input dtype)
#   out_ref : (1, TILE_E)   lane-dense score row tile (f32)
# ---------------------------------------------------------------------------
def _edge_score_kernel(p_ref, a_ref, out_ref):
    sw = lax.dot_general(
        p_ref[...], a_ref[...].astype(jnp.float32),
        dimension_numbers=(((1,), (1,)), ((), ())),
        preferred_element_type=jnp.float32)
    out_ref[...] = jax.nn.sigmoid(jnp.log(sw) + 1e-05)


def edge_scores_pallas(embed, syn_idx, tail_idx, w, *, target_tile_bytes=2 << 20):
    """embed: (N, D); syn_idx/tail_idx: (E,) int; w: (E, 1).  Returns (E, 1) f32."""
    E = int(syn_idx.shape[0])
    D = int(embed.shape[1])
    itemsize = jnp.dtype(embed.dtype).itemsize

    # Edge-tile size: multiple of 128 lanes, ~target_tile_bytes of A per grid
    # step (amortizes per-step overhead), capped so the double-buffered tile
    # always fits the default scoped VMEM on every generation (incl. v7x).
    tile_e = target_tile_bytes // max(D * itemsize, 1)
    tile_e = max(128, min(16384, _round_up(tile_e, 128)))
    tile_e = min(tile_e, _round_up(E, 128))
    E_pad = _round_up(E, tile_e)
    grid = (E_pad // tile_e,)

    # Pad the gather *indices* (not the gathered arrays) so the gathers emit
    # padded operands directly; padded weight entries are zero so they do not
    # perturb p, and padded A rows are sliced off the output.
    pad = E_pad - E
    if pad:
        syn_idx = jnp.concatenate([syn_idx, jnp.zeros((pad,), syn_idx.dtype)])
        tail_idx = jnp.concatenate([tail_idx, jnp.zeros((pad,), tail_idx.dtype)])
    a = embed[syn_idx]     # (E_pad, D), streamed in input dtype (bf16 ok)
    b = embed[tail_idx]    # (E_pad, D), streamed in input dtype
    w_row = jnp.zeros((1, E_pad), jnp.float32).at[0, :E].set(
        w.reshape(-1).astype(jnp.float32))

    # ---- Pass 1: p = W^T @ B  (B never VMEM-resident; reduction grid). ----
    p = pl.pallas_call(
        _p_reduce_kernel,
        out_shape=jax.ShapeDtypeStruct((1, D), jnp.float32),
        grid_spec=pltpu.PrefetchScalarGridSpec(
            num_scalar_prefetch=0,
            grid=grid,
            in_specs=[
                pl.BlockSpec((1, tile_e), lambda i: (0, i)),   # W row tile
                pl.BlockSpec((tile_e, D), lambda i: (i, 0)),   # B row tile
            ],
            out_specs=pl.BlockSpec((1, D), lambda i: (0, 0)),  # p accumulator
        ),
        compiler_params=pltpu.CompilerParams(
            dimension_semantics=("arbitrary",)),               # reduction axis
    )(w_row, b)

    # ---- Pass 2: scores = sigmoid(log(A p) + 1e-5), parallel row tiles. ----
    out_row = pl.pallas_call(
        _edge_score_kernel,
        out_shape=jax.ShapeDtypeStruct((1, E_pad), jnp.float32),
        grid_spec=pltpu.PrefetchScalarGridSpec(
            num_scalar_prefetch=0,
            grid=grid,
            in_specs=[
                pl.BlockSpec((1, D), lambda i: (0, 0)),        # p: resident
                pl.BlockSpec((tile_e, D), lambda i: (i, 0)),   # A: streamed
            ],
            out_specs=pl.BlockSpec((1, tile_e), lambda i: (0, i)),
        ),
        compiler_params=pltpu.CompilerParams(
            dimension_semantics=("parallel",)),                # shards on v7x
    )(p, a)

    return out_row[0, :E].reshape(E, 1)


# ---------------------------------------------------------------------------
# JAX port of the EdgeGenerator module (forward only).
# ---------------------------------------------------------------------------
class EdgeGeneratorPallas:
    def __init__(self, tail_corr_syn_dict_lists, threshold, key):
        # Flatten {tail_k: [syn, ...]} dicts into [syn, tail] index pairs,
        # exactly as the PyTorch __init__ does.
        syn_corr_tail_list = []
        for d in tail_corr_syn_dict_lists:
            pairs = []
            for k, v in d.items():
                for syn in v:
                    pairs.append([syn, k])
            syn_corr_tail_list.append(np.array(pairs, dtype=np.int32))
        self.syn_corr_tail_list = syn_corr_tail_list
        self.threshold = threshold

        # Deterministic Xavier-uniform init of weight[i] with shape (E_i, 1),
        # matching nn.init.xavier_uniform_ (fan_in=1, fan_out=E_i).
        self.weight = []
        for pairs in syn_corr_tail_list:
            E = pairs.shape[0]
            bound = float(np.sqrt(6.0 / (E + 1)))
            key, sub = jax.random.split(key)
            w = jax.random.uniform(
                sub, (E, 1), dtype=jnp.float32, minval=-bound, maxval=bound
            )
            self.weight.append(w)

    def forward(self, embed_list):
        # TODO(synk): fuse the embed[idx] gathers into the kernel (scalar-
        # prefetched index arrays + manual row DMA) and batch all relations
        # into one pallas_call to amortize launch overhead; kept as JAX glue.
        edge_score_list = []
        for i, pairs in enumerate(self.syn_corr_tail_list):
            syn_idx = jnp.asarray(pairs[:, 0])
            tail_idx = jnp.asarray(pairs[:, 1])
            edge_score_list.append(
                edge_scores_pallas(embed_list[i], syn_idx, tail_idx, self.weight[i]))
        return edge_score_list

    # TODO(synk): get_new_adj mutates a dense adjacency with a python loop +
    # sparse conversion; it is host-side bookkeeping, not a kernel, and is
    # intentionally not ported.


# Pure-JAX references for the sanity check.
def _ref_scores_torch_order(a, b, w):
    # Exactly the PyTorch association: (A @ B.T) @ W.
    return jax.nn.sigmoid(jnp.log((a @ b.T) @ w) + 1e-05)


def _ref_scores_reassoc(a, b, w):
    # Same (mathematically identical) association as the kernel.
    return jax.nn.sigmoid(jnp.log(a @ (b.T @ w)) + 1e-05)


if __name__ == "__main__":
    key = jax.random.PRNGKey(0)

    # Small synthetic graph: 16 nodes, 32-dim embeddings, 2 relations.
    N, D = 16, 32

    # Relation 0: 4 tails, 2 synthetic nodes each -> 8 edges.
    rel0 = {0: [4, 5], 1: [6, 7], 2: [8, 9], 3: [10, 11]}
    # Relation 1: 4 tails, 4 synthetic nodes each -> 16 edges.
    rel1 = {0: [4, 5, 6, 7], 1: [8, 9, 10, 11], 2: [12, 13, 14, 15], 3: [1, 2, 3, 5]}
    tail_corr_syn_dict_lists = [rel0, rel1]

    key, k_w, k_e0, k_e1 = jax.random.split(key, 4)
    gen = EdgeGeneratorPallas(tail_corr_syn_dict_lists, threshold=0.5, key=k_w)

    # Positive embeddings so log() stays finite (matches typical usage).
    embed_list = [
        jax.random.uniform(k_e0, (N, D), dtype=jnp.float32, minval=0.1, maxval=1.0),
        jax.random.uniform(k_e1, (N, D), dtype=jnp.float32, minval=0.1, maxval=1.0),
    ]

    out = gen.forward(embed_list)
    out = [jax.block_until_ready(o) for o in out]

    # Sanity check against pure-JAX references.
    for i, pairs in enumerate(gen.syn_corr_tail_list):
        a = embed_list[i][jnp.asarray(pairs[:, 0])]
        b = embed_list[i][jnp.asarray(pairs[:, 1])]
        got = np.asarray(out[i])
        assert got.shape == (pairs.shape[0], 1)
        ref_re = np.asarray(_ref_scores_reassoc(a, b, gen.weight[i]))
        ref_to = np.asarray(_ref_scores_torch_order(a, b, gen.weight[i]))
        # Tight check vs the kernel's own association order.
        np.testing.assert_allclose(got, ref_re, rtol=1e-3, atol=1e-4)
        # Check vs the original PyTorch association (f32 rounding-order only).
        np.testing.assert_allclose(got, ref_to, rtol=5e-3, atol=5e-4)

    print("KERNEL_OK")
</pallas_src>

<mosaic_0001>
module attributes {stable_mosaic.version = 11 : i64} {
  func.func @_p_reduce_kernel(%arg0: i32, %arg1: memref<1x128xf32, #tpu.memory_space<vmem>>, %arg2: memref<128x32xf32, #tpu.memory_space<vmem>>, %arg3: memref<1x32xf32, #tpu.memory_space<vmem>>) attributes {dimension_semantics = [#tpu.dimension_semantics<arbitrary>], iteration_bounds = array<i64: 1>, scalar_prefetch = 0 : i64, scratch_operands = 0 : i64, tpu.core_type = #tpu.core_type<tc>, window_params = [{transform_indices = @transform_0, window_bounds = array<i64: 1, 128>}, {transform_indices = @transform_1, window_bounds = array<i64: 128, 32>}, {pipeline_mode = #tpu.pipeline_mode<synchronous>, transform_indices = @transform_2, window_bounds = array<i64: 1, 32>}]} {
    %c0_i32 = arith.constant 0 : i32
    %0 = arith.cmpi eq, %arg0, %c0_i32 : i32
    %1 = arith.extui %0 : i1 to i32
    %c0_i32_0 = arith.constant 0 : i32
    %2 = arith.cmpi ne, %1, %c0_i32_0 : i32
    scf.if %2 {
      %cst_8 = arith.constant 0.000000e+00 : f32
      %9 = vector.broadcast %cst_8 : f32 to vector<1x32xf32>
      %c0_9 = arith.constant 0 : index
      %c0_10 = arith.constant 0 : index
      %10 = vector.load %arg3[%c0_9, %c0_10] : memref<1x32xf32, #tpu.memory_space<vmem>>, vector<1x32xf32>
      tpu.vector_store %arg3[%c0_9, %c0_10], %9 {strides = array<i32>} : memref<1x32xf32, #tpu.memory_space<vmem>>, vector<1x32xf32>,
    } else {
    }
    %c0 = arith.constant 0 : index
    %c0_1 = arith.constant 0 : index
    %3 = vector.load %arg3[%c0, %c0_1] : memref<1x32xf32, #tpu.memory_space<vmem>>, vector<1x32xf32>
    %c0_2 = arith.constant 0 : index
    %c0_3 = arith.constant 0 : index
    %4 = vector.load %arg1[%c0_2, %c0_3] : memref<1x128xf32, #tpu.memory_space<vmem>>, vector<1x128xf32>
    %c0_4 = arith.constant 0 : index
    %c0_5 = arith.constant 0 : index
    %5 = vector.load %arg2[%c0_4, %c0_5] : memref<128x32xf32, #tpu.memory_space<vmem>>, vector<128x32xf32>
    %cst = arith.constant dense<0.000000e+00> : vector<1x32xf32>
    %6 = tpu.matmul %4, %5, %cst {dimension_numbers = #tpu.dot_dimension_numbers<[1], [0], [0], [1], [0, 0, 1, 1], [], []>} : vector<1x128xf32>, vector<128x32xf32>, vector<1x32xf32> -> vector<1x32xf32>
    %7 = arith.addf %3, %6 : vector<1x32xf32>
    %c0_6 = arith.constant 0 : index
    %c0_7 = arith.constant 0 : index
    %8 = vector.load %arg3[%c0_6, %c0_7] : memref<1x32xf32, #tpu.memory_space<vmem>>, vector<1x32xf32>
    tpu.vector_store %arg3[%c0_6, %c0_7], %7 {strides = array<i32>} : memref<1x32xf32, #tpu.memory_space<vmem>>, vector<1x32xf32>,
    return
  }
  func.func @transform_0(%arg0: i32) -> (i32, i32) {
    %c0_i32 = arith.constant 0 : i32
    %c0_i32_0 = arith.constant 0 : i32
    return %c0_i32, %arg0 : i32, i32
  }
  func.func @transform_1(%arg0: i32) -> (i32, i32) {
    %c0_i32 = arith.constant 0 : i32
    %c0_i32_0 = arith.constant 0 : i32
    return %arg0, %c0_i32 : i32, i32
  }
  func.func @transform_2(%arg0: i32) -> (i32, i32) {
    %c0_i32 = arith.constant 0 : i32
    %c0_i32_0 = arith.constant 0 : i32
    %c0_i32_1 = arith.constant 0 : i32
    return %c0_i32, %c0_i32_0 : i32, i32
  }
}

</mosaic_0001>

<llo_original>
// kernel: tpu_custom_call.1
$region0: #{tpu_custom_call.1}
  #allocation0 [shape = 'u32[]', space=smem, size = 0x4, offset = 0x4, fixed_abs, tag = 'smem constant byte address 0x4 - core index']
  #allocation1 [shape = 'u32[144,128]{1,0:T(1,128)}', space=vmem, size = 0x12000, scoped, tag = 'internal scratch']
  %s0 = inlined_call_operand.vmem [shape: f32[1,128], index: 0, kind: input, shape index: {}]
  %s1 = inlined_call_operand.vmem [shape: f32[128,32], index: 1, kind: input, shape index: {}]
  %s2 = inlined_call_operand.hbm [shape: f32[1,32], index: 2, kind: output, shape index: {}]
  %s3 = sld [smem:[#allocation0]]
  $region22: #{tpu_custom_call.1} parent=0
    _
  %s5 = ssub.s32 1, %s3
  %s6 = scalar_select 0, %s5, %s3
  $region1: #{tpu_custom_call.1} parent=0
    #allocation2 [shape = 'u8[512]{0}', space=vmem, size = 0x400, scoped, tag = 'output window, operand 0, single buffered']
    #allocation3 [shape = 's32[1]{0}', space=sflag, size = 0x4, scoped, tag = 'scoped memory for tpu_custom_call.1']
    %7 = vsyncpa [#allocation3], 0
    // Predicated region
    $region2: #{tpu_custom_call.1} parent=1 // pred_check
      _
    $region3: #{tpu_custom_call.1} parent=1 // pred_check_branch
      %9 = sbr.rel (0) target = $region5
    $region4: #{tpu_custom_call.1} parent=1 // pred_region
      _
    $region5: #{tpu_custom_call.1} parent=1 // pred_fallthru
      _
    // Predicated region
    $region6: #{tpu_custom_call.1} parent=1 // pred_check
      _
    $region7: #{tpu_custom_call.1} parent=1 // pred_check_branch
      %11 = sbr.rel (0) target = $region9
    $region8: #{tpu_custom_call.1} parent=1 // pred_region
      _
    $region9: #{tpu_custom_call.1} parent=1 // pred_fallthru
      _
    %p12 = scmp.eq.s32.totalorder 0, 0
    // Predicated region
    $region10: #{tpu_custom_call.1} parent=1 // pred_check
      %p13 = pneg %p12
    $region11: #{tpu_custom_call.1} parent=1 // pred_check_branch
      %15 = sbr.rel (%p13) target = $region13
    $region12: #{tpu_custom_call.1} parent=1 // pred_region
      %vm16 = vcmask 253952
      %17 = vst.msk [vmem:[#allocation2] sm:$0x1] %vm16, 0.0
    $region13: #{tpu_custom_call.1} parent=1 // pred_fallthru
      _
    %v18 = vld [vmem:[#allocation2] sm:$0x1]
    %v19 = vld [vmem:[%s0] sm:$0x1]
    %v20 = vld [vmem:[%s1] sm:$0xff]
    %v21 = vld [vmem:[%s1 + $0x8] sm:$0xff]
    %v22 = vld [vmem:[%s1 + $0x10] sm:$0xff]
    %v23 = vld [vmem:[%s1 + $0x18] sm:$0xff]
    %v24 = vld [vmem:[%s1 + $0x20] sm:$0xff]
    %v25 = vld [vmem:[%s1 + $0x28] sm:$0xff]
    %v26 = vld [vmem:[%s1 + $0x30] sm:$0xff]
    %v27 = vld [vmem:[%s1 + $0x38] sm:$0xff]
    %v28 = vld [vmem:[%s1 + $0x40] sm:$0xff]
    %v29 = vld [vmem:[%s1 + $0x48] sm:$0xff]
    %v30 = vld [vmem:[%s1 + $0x50] sm:$0xff]
    %v31 = vld [vmem:[%s1 + $0x58] sm:$0xff]
    %v32 = vld [vmem:[%s1 + $0x60] sm:$0xff]
    %v33 = vld [vmem:[%s1 + $0x68] sm:$0xff]
    %v34 = vld [vmem:[%s1 + $0x70] sm:$0xff]
    %v35 = vld [vmem:[%s1 + $0x78] sm:$0xff]
    %36 = vmatprep.subr.mxu0 0.0
    %37 = vmatpush1.msra.mxu0 %v20
    %38 = vmatprep.subr.mxu0 0.0
    %39 = vmatpush1.msra.mxu0 %v21
    %40 = vmatprep.subr.mxu0 0.0
    %41 = vmatpush1.msra.mxu0 %v22
    %42 = vmatprep.subr.mxu0 0.0
    %43 = vmatpush1.msra.mxu0 %v23
    %44 = vmatprep.subr.mxu0 0.0
    %45 = vmatpush1.msra.mxu0 %v24
    %46 = vmatprep.subr.mxu0 0.0
    %47 = vmatpush1.msra.mxu0 %v25
    %48 = vmatprep.subr.mxu0 0.0
    %49 = vmatpush1.msra.mxu0 %v26
    %50 = vmatprep.subr.mxu0 0.0
    %51 = vmatpush1.msra.mxu0 %v27
    %52 = vmatprep.subr.mxu0 0.0
    %53 = vmatpush1.msra.mxu0 %v28
    %54 = vmatprep.subr.mxu0 0.0
    %55 = vmatpush1.msra.mxu0 %v29
    %56 = vmatprep.subr.mxu0 0.0
    %57 = vmatpush1.msra.mxu0 %v30
    %58 = vmatprep.subr.mxu0 0.0
    %59 = vmatpush1.msra.mxu0 %v31
    %60 = vmatprep.subr.mxu0 0.0
    %61 = vmatpush1.msra.mxu0 %v32
    %62 = vmatprep.subr.mxu0 0.0
    %63 = vmatpush1.msra.mxu0 %v33
    %64 = vmatprep.subr.mxu0 0.0
    %65 = vmatpush1.msra.mxu0 %v34
    %66 = vmatprep.subr.mxu0 0.0
    %67 = vmatpush1.msra.mxu0 %v35
    %68 = vmatprep.subr.mxu0 0.0
    %69 = vmatpush1.msra.mxu0 0.0
    %70 = vmatprep.subr.mxu0 0.0
    %71 = vmatpush1.msra.mxu0 0.0
    %72 = vmatprep.subr.mxu0 0.0
    %73 = vmatpush1.msra.mxu0 0.0
    %74 = vmatprep.subr.mxu0 0.0
    %75 = vmatpush1.msra.mxu0 0.0
    %76 = vmatprep.subr.mxu0 0.0
    %77 = vmatpush1.msra.mxu0 0.0
    %78 = vmatprep.subr.mxu0 0.0
    %79 = vmatpush1.msra.mxu0 0.0
    %80 = vmatprep.subr.mxu0 0.0
    %81 = vmatpush1.msra.mxu0 0.0
    %82 = vmatprep.subr.mxu0 0.0
    %83 = vmatpush1.msra.mxu0 0.0
    %84 = vmatprep.subr.mxu0 0.0
    %85 = vmatpush1.msra.mxu0 0.0
    %86 = vmatprep.subr.mxu0 0.0
    %87 = vmatpush1.msra.mxu0 0.0
    %88 = vmatprep.subr.mxu0 0.0
    %89 = vmatpush1.msra.mxu0 0.0
    %90 = vmatprep.subr.mxu0 0.0
    %91 = vmatpush1.msra.mxu0 0.0
    %92 = vmatprep.subr.mxu0 0.0
    %93 = vmatpush1.msra.mxu0 0.0
    %94 = vmatprep.subr.mxu0 0.0
    %95 = vmatpush1.msra.mxu0 0.0
    %96 = vmatprep.subr.mxu0 0.0
    %97 = vmatpush1.msra.mxu0 0.0
    %98 = vmatprep.subr.mxu0 0.0
    %99 = vmatpush1.msra.mxu0 0.0
    %100 = vmatprep.mubr.f32.mxu0 0.0
    %101 = vmatmul.mubr.f32.gmra.mrb[0].mxu0 %v19
    %v102 = vpop.f32.mrb[0].mxu0
    %v103 = vadd.f32 0.0, %v102
    %v104 = vpop.f32.mrb[0].mxu0
    %105 = vdwg.mxu0
    %v106 = vadd.f32 %v18, %v103
    %vm107 = vcmask 253952
    %108 = vst.msk [vmem:[#allocation2] sm:$0x1] %vm107, %v106
    // Predicated region
    $region14: #{tpu_custom_call.1} parent=1 // pred_check
      _
    $region15: #{tpu_custom_call.1} parent=1 // pred_check_branch
      %110 = sbr.rel (0) target = $region17
    $region16: #{tpu_custom_call.1} parent=1 // pred_region
      %s112 = ssub.s32 16, 16
      %113 = vsyncadd [#allocation3], %s112
      %s115 = sshll.u32 [#allocation2], 4
      %s116 = int_to_ptr.vmem [resolvable:$true] %s115
      %118 = dma.vmem_to_hbm [thread:$0]  %s116, 16, %s2, [#allocation3]
    $region17: #{tpu_custom_call.1} parent=1 // pred_fallthru
      _
    // Predicated region
    $region18: #{tpu_custom_call.1} parent=1 // pred_check
      _
    $region19: #{tpu_custom_call.1} parent=1 // pred_check_branch
      %120 = sbr.rel (0) target = $region21
    $region20: #{tpu_custom_call.1} parent=1 // pred_region
      %121 = dma.done [#allocation3], 16
    $region21: #{tpu_custom_call.1} parent=1 // pred_fallthru
      _
    %122 = vsyncpa [#allocation3], 1

</llo_original>
